<compile_context>
chip_gen: v6e
topology: v6e:2x2x1
jax: 0.10.0
libtpu: 0.0.40
codegen_flags: <defaults>
</compile_context>

<pallas_src>
import jax
import jax.numpy as jnp
from jax.experimental import pallas as pl
from jax.experimental.pallas import tpu as pltpu


def _round_up(x, m):
    return ((x + m - 1) // m) * m


def _pad_axis(x, axis, target):
    pad = target - x.shape[axis]
    if pad <= 0:
        return x
    widths = [(0, 0)] * x.ndim
    widths[axis] = (0, pad)
    return jnp.pad(x, widths)


def _pick_tile(total, want, unit):
    """Largest multiple of `unit` that is <= min(want, total) and divides `total`."""
    t = max(unit, (min(want, total) // unit) * unit)
    while total % t:
        t -= unit
    return t


def _gcn_layer_kernel(a_ref, xk_ref, xr_ref, wgc_ref, bgc_ref, wres_ref, bres_ref,
                      scale_ref, shift_ref, out_ref, acc_ref):
    # a_ref    : (TN, TK)      bf16 adjacency tile (rows = destination nodes, cols = K slice)
    # xk_ref   : (TK, Fin)     bf16 node-feature K tile (aggregation operand)
    # xr_ref   : (TN, Fin)     bf16 node-feature row tile (residual operand)
    # wgc_ref  : (Fin, Fo_pad) bf16 GraphConv weight (resident, single buffered)
    # bgc_ref  : (1, Fo_pad)   f32  GraphConv bias
    # wres_ref : (Fin, Fo_pad) bf16 residual Linear weight (already transposed)
    # bres_ref : (1, Fo_pad)   f32  residual Linear bias
    # scale_ref/shift_ref : (1, Fo_pad) f32 folded BatchNorm1d (inference) scale / shift
    # out_ref  : (TN, Fo_pad)
    # acc_ref  : (TN, Fin)     f32 aggregation accumulator (VMEM scratch)
    k = pl.program_id(1)

    @pl.when(k == 0)
    def _init():
        acc_ref[...] = jnp.zeros_like(acc_ref)

    # Partial aggregation over this K tile of the adjacency: (TN, TK) @ (TK, Fin), f32 accumulate.
    acc_ref[...] += jnp.dot(a_ref[...], xk_ref[...],
                            preferred_element_type=jnp.float32)

    @pl.when(k == pl.num_programs(1) - 1)
    def _finalize():
        agg = acc_ref[...].astype(jnp.bfloat16)

        # GraphConv linear + bias.
        gc = jnp.dot(agg, wgc_ref[...],
                     preferred_element_type=jnp.float32) + bgc_ref[...]
        # Residual branch: Linear(in_feats, out_feats) + bias on the raw features.
        res = jnp.dot(xr_ref[...], wres_ref[...],
                      preferred_element_type=jnp.float32) + bres_ref[...]

        # ReLU on both branches, residual add; dropout p=0.0 -> identity.
        h = jnp.maximum(gc, 0.0) + jnp.maximum(res, 0.0)

        # BatchNorm1d (inference) folded into per-feature scale/shift.
        out_ref[...] = (h * scale_ref[...] + shift_ref[...]).astype(out_ref.dtype)


def gcn_layer_forward(adj, feats, w_gc, b_gc, w_res, b_res,
                      gamma, beta, running_mean, running_var,
                      *, eps=1e-5, row_tile=256, k_tile=512,
                      out_dtype=jnp.float32):
    """adj: (N, N) dense adjacency (adj[i, j] = 1 for edge j->i), feats: (N, Fin),
    w_gc: (Fin, Fout), b_gc: (Fout,), w_res: (Fin, Fout) (= Linear.weight.T), b_res: (Fout,),
    gamma/beta/running_mean/running_var: (Fout,)  ->  (N, Fout).

    row_tile / k_tile are per-generation knobs: on single-TC chips (v5e/v6e) use the largest
    tiles that fit VMEM; on v7x (2 TCs, 64 MiB VMEM) keep an even number of row tiles >= 2.
    """
    N, Fin = feats.shape
    Fout = w_gc.shape[1]

    # Fold inference-mode BatchNorm1d into a per-feature scale/shift (f32).
    inv_std = jax.lax.rsqrt(running_var.astype(jnp.float32) + eps)
    bn_scale = (gamma.astype(jnp.float32) * inv_std).reshape(1, Fout)
    bn_shift = (beta.astype(jnp.float32)
                - running_mean.astype(jnp.float32) * gamma.astype(jnp.float32) * inv_std
                ).reshape(1, Fout)

    # Lane-aligned padding: node axis to a multiple of 128 (K / lane dim of adjacency tiles),
    # output features to a multiple of 128 (lane-dense unmasked stores).
    n_pad = _round_up(N, 128)
    fo_pad = _round_up(Fout, 128)
    tn = _pick_tile(n_pad, row_tile, 8)      # row tile (sublane-aligned)
    tk = _pick_tile(n_pad, k_tile, 128)      # K tile (lane-aligned)

    # bf16 operands for the MXU (adjacency is exactly representable), f32 accumulation in-kernel.
    adj_p = _pad_axis(_pad_axis(adj, 0, n_pad), 1, n_pad).astype(jnp.bfloat16)
    feats_p = _pad_axis(feats, 0, n_pad).astype(jnp.bfloat16)
    wgc_p = _pad_axis(w_gc, 1, fo_pad).astype(jnp.bfloat16)
    wres_p = _pad_axis(w_res, 1, fo_pad).astype(jnp.bfloat16)
    bgc_p = _pad_axis(b_gc.reshape(1, Fout).astype(jnp.float32), 1, fo_pad)
    bres_p = _pad_axis(b_res.reshape(1, Fout).astype(jnp.float32), 1, fo_pad)
    scale_p = _pad_axis(bn_scale, 1, fo_pad)
    shift_p = _pad_axis(bn_shift, 1, fo_pad)

    grid = (n_pad // tn, n_pad // tk)

    # VMEM budget: streamed tiles double-buffered, residents single-buffered, f32 accumulator.
    vmem_bytes = (
        2 * tn * tk * 2            # adjacency tile (bf16, double buffered)
        + 2 * tk * Fin * 2         # X K-tile (bf16, double buffered)
        + 2 * tn * Fin * 2         # X row-tile (bf16, double buffered)
        + 2 * Fin * fo_pad * 2     # two resident weights (bf16, single buffered)
        + 4 * fo_pad * 4           # biases + BN scale/shift (f32, single buffered)
        + 2 * tn * fo_pad * 4      # output tile (double buffered)
        + tn * max(Fin, 128) * 4   # f32 accumulator scratch (lane-padded)
    )
    vmem_limit = int(min(2 * vmem_bytes + (8 << 20), 48 << 20))

    flops = (2 * n_pad * n_pad * Fin              # A @ X
             + 2 * 2 * n_pad * Fin * fo_pad       # two (TN,Fin)@(Fin,Fo_pad) matmuls
             + 6 * n_pad * fo_pad)                # relu/add/scale/shift
    bytes_accessed = (2 * adj_p.size + 2 * 2 * feats_p.size
                      + 2 * (wgc_p.size + wres_p.size)
                      + 4 * 4 * fo_pad + 4 * n_pad * fo_pad)

    resident = dict(pipeline_mode=pl.Buffered(1))   # constant index_map -> one VMEM buffer

    out = pl.pallas_call(
        _gcn_layer_kernel,
        out_shape=jax.ShapeDtypeStruct((n_pad, fo_pad), out_dtype),
        grid_spec=pltpu.PrefetchScalarGridSpec(
            num_scalar_prefetch=0,
            grid=grid,
            in_specs=[
                pl.BlockSpec((tn, tk), lambda i, k: (i, k)),              # adjacency tile (streamed)
                pl.BlockSpec((tk, Fin), lambda i, k: (k, 0)),             # X K-tile (streamed over k)
                pl.BlockSpec((tn, Fin), lambda i, k: (i, 0)),             # X row-tile (residual branch)
                pl.BlockSpec((Fin, fo_pad), lambda i, k: (0, 0), **resident),   # W_gc
                pl.BlockSpec((1, fo_pad), lambda i, k: (0, 0), **resident),     # b_gc
                pl.BlockSpec((Fin, fo_pad), lambda i, k: (0, 0), **resident),   # W_res
                pl.BlockSpec((1, fo_pad), lambda i, k: (0, 0), **resident),     # b_res
                pl.BlockSpec((1, fo_pad), lambda i, k: (0, 0), **resident),     # BN scale
                pl.BlockSpec((1, fo_pad), lambda i, k: (0, 0), **resident),     # BN shift
            ],
            out_specs=pl.BlockSpec((tn, fo_pad), lambda i, k: (i, 0)),
            scratch_shapes=[pltpu.VMEM((tn, Fin), jnp.float32)],
        ),
        compiler_params=pltpu.CompilerParams(
            dimension_semantics=("parallel", "arbitrary"),
            vmem_limit_bytes=vmem_limit),
        cost_estimate=pl.CostEstimate(
            flops=int(flops), transcendentals=0, bytes_accessed=int(bytes_accessed)),
    )(adj_p, feats_p, feats_p, wgc_p, bgc_p, wres_p, bres_p, scale_p, shift_p)

    return out[:N, :Fout]


def _reference(adj, feats, w_gc, b_gc, w_res, b_res, gamma, beta, mean, var,
               eps=1e-5, mirror_bf16=False):
    """Pure-JAX reference. mirror_bf16=True mimics the kernel's bf16 operand rounding."""
    if mirror_bf16:
        cast = lambda a: a.astype(jnp.bfloat16).astype(jnp.float32)
    else:
        cast = lambda a: a.astype(jnp.float32)
    a = cast(adj); x = cast(feats); wg = cast(w_gc); wr = cast(w_res)
    agg = a @ x
    if mirror_bf16:
        agg = agg.astype(jnp.bfloat16).astype(jnp.float32)
    gc = jax.nn.relu(agg @ wg + b_gc)
    res = jax.nn.relu(x @ wr + b_res)
    h = gc + res                                   # dropout p=0.0 -> identity
    return (h - mean) / jnp.sqrt(var + eps) * gamma + beta


if __name__ == "__main__":
    # Batch of 2 graphs x 64 nodes = 128 total nodes; in_feats=32, out_feats=16.
    N, Fin, Fout = 128, 32, 16
    n_graphs = 2
    n_per = N // n_graphs

    key = jax.random.PRNGKey(0)
    ks = jax.random.split(key, 10)

    # Dense block-diagonal adjacency (edges only within each graph), gnn_norm='none'.
    rand_adj = (jax.random.uniform(ks[0], (N, N)) < 0.1).astype(jnp.float32)
    block_mask = jnp.kron(jnp.eye(n_graphs, dtype=jnp.float32),
                          jnp.ones((n_per, n_per), dtype=jnp.float32))
    adj = rand_adj * block_mask

    feats = jax.random.normal(ks[1], (N, Fin), dtype=jnp.float32)

    w_gc = jax.random.normal(ks[2], (Fin, Fout), dtype=jnp.float32) * 0.1    # GraphConv weight
    b_gc = jax.random.normal(ks[3], (Fout,), dtype=jnp.float32) * 0.1
    w_res = jax.random.normal(ks[4], (Fin, Fout), dtype=jnp.float32) * 0.1   # res_connection weight^T
    b_res = jax.random.normal(ks[5], (Fout,), dtype=jnp.float32) * 0.1

    gamma = 1.0 + 0.1 * jax.random.normal(ks[6], (Fout,), dtype=jnp.float32)
    beta = 0.1 * jax.random.normal(ks[7], (Fout,), dtype=jnp.float32)
    running_mean = 0.1 * jax.random.normal(ks[8], (Fout,), dtype=jnp.float32)
    running_var = jnp.abs(1.0 + 0.1 * jax.random.normal(ks[9], (Fout,), dtype=jnp.float32))

    out = gcn_layer_forward(adj, feats, w_gc, b_gc, w_res, b_res,
                            gamma, beta, running_mean, running_var)
    out = jax.block_until_ready(out)
    assert out.shape == (N, Fout)

    # Tight check vs. a reference that mirrors the kernel's bf16 operand rounding.
    ref_lp = _reference(adj, feats, w_gc, b_gc, w_res, b_res,
                        gamma, beta, running_mean, running_var, mirror_bf16=True)
    err_lp = float(jnp.max(jnp.abs(out - ref_lp)))
    assert jnp.allclose(out, ref_lp, atol=1e-2, rtol=1e-2), f"bf16-mirrored max abs err {err_lp}"

    # Loose sanity check vs. the pure-f32 reference (bounds the bf16 quantization error).
    ref_f32 = _reference(adj, feats, w_gc, b_gc, w_res, b_res,
                         gamma, beta, running_mean, running_var, mirror_bf16=False)
    err_f32 = float(jnp.max(jnp.abs(out - ref_f32)))
    assert jnp.allclose(out, ref_f32, atol=1e-1, rtol=1e-1), f"f32 max abs err {err_f32}"

    print("KERNEL_OK")
</pallas_src>

<mosaic_0001>
module attributes {stable_mosaic.version = 11 : i64} {
  func.func @_gcn_layer_kernel(%arg0: i32, %arg1: i32, %arg2: memref<128x128xbf16, #tpu.memory_space<vmem>>, %arg3: memref<128x32xbf16, #tpu.memory_space<vmem>>, %arg4: memref<128x32xbf16, #tpu.memory_space<vmem>>, %arg5: memref<32x128xbf16, #tpu.memory_space<vmem>>, %arg6: memref<1x128xf32, #tpu.memory_space<vmem>>, %arg7: memref<32x128xbf16, #tpu.memory_space<vmem>>, %arg8: memref<1x128xf32, #tpu.memory_space<vmem>>, %arg9: memref<1x128xf32, #tpu.memory_space<vmem>>, %arg10: memref<1x128xf32, #tpu.memory_space<vmem>>, %arg11: memref<128x128xf32, #tpu.memory_space<vmem>>, %arg12: memref<128x32xf32, #tpu.memory_space<vmem>>) attributes {dimension_semantics = [#tpu.dimension_semantics<parallel>, #tpu.dimension_semantics<arbitrary>], iteration_bounds = array<i64: 1, 1>, scalar_prefetch = 0 : i64, scratch_operands = 1 : i64, tpu.core_type = #tpu.core_type<tc>, window_params = [{transform_indices = @transform_0, window_bounds = array<i64: 128, 128>}, {transform_indices = @transform_1, window_bounds = array<i64: 128, 32>}, {transform_indices = @transform_2, window_bounds = array<i64: 128, 32>}, {pipeline_mode = #tpu.pipeline_mode<synchronous>, transform_indices = @transform_3, window_bounds = array<i64: 32, 128>}, {pipeline_mode = #tpu.pipeline_mode<synchronous>, transform_indices = @transform_4, window_bounds = array<i64: 1, 128>}, {pipeline_mode = #tpu.pipeline_mode<synchronous>, transform_indices = @transform_5, window_bounds = array<i64: 32, 128>}, {pipeline_mode = #tpu.pipeline_mode<synchronous>, transform_indices = @transform_6, window_bounds = array<i64: 1, 128>}, {pipeline_mode = #tpu.pipeline_mode<synchronous>, transform_indices = @transform_7, window_bounds = array<i64: 1, 128>}, {pipeline_mode = #tpu.pipeline_mode<synchronous>, transform_indices = @transform_8, window_bounds = array<i64: 1, 128>}, {transform_indices = @transform_9, window_bounds = array<i64: 128, 128>}]} {
    %c0_i32 = arith.constant 0 : i32
    %0 = arith.cmpi eq, %arg1, %c0_i32 : i32
    %1 = arith.extui %0 : i1 to i32
    %c0_i32_0 = arith.constant 0 : i32
    %2 = arith.cmpi ne, %1, %c0_i32_0 : i32
    scf.if %2 {
      %cst_10 = arith.constant 0.000000e+00 : f32
      %12 = vector.broadcast %cst_10 : f32 to vector<128x32xf32>
      %c0_11 = arith.constant 0 : index
      %c0_12 = arith.constant 0 : index
      %13 = vector.load %arg12[%c0_11, %c0_12] : memref<128x32xf32, #tpu.memory_space<vmem>>, vector<128x32xf32>
      tpu.vector_store %arg12[%c0_11, %c0_12], %12 {strides = array<i32>} : memref<128x32xf32, #tpu.memory_space<vmem>>, vector<128x32xf32>,
    } else {
    }
    %c0 = arith.constant 0 : index
    %c0_1 = arith.constant 0 : index
    %3 = vector.load %arg12[%c0, %c0_1] : memref<128x32xf32, #tpu.memory_space<vmem>>, vector<128x32xf32>
    %c0_2 = arith.constant 0 : index
    %c0_3 = arith.constant 0 : index
    %4 = vector.load %arg2[%c0_2, %c0_3] : memref<128x128xbf16, #tpu.memory_space<vmem>>, vector<128x128xbf16>
    %c0_4 = arith.constant 0 : index
    %c0_5 = arith.constant 0 : index
    %5 = vector.load %arg3[%c0_4, %c0_5] : memref<128x32xbf16, #tpu.memory_space<vmem>>, vector<128x32xbf16>
    %cst = arith.constant dense<0.000000e+00> : vector<128x32xf32>
    %6 = tpu.matmul %4, %5, %cst {dimension_numbers = #tpu.dot_dimension_numbers<[1], [0], [0], [1], [0, 0, 1, 1], [], []>} : vector<128x128xbf16>, vector<128x32xbf16>, vector<128x32xf32> -> vector<128x32xf32>
    %7 = arith.addf %3, %6 : vector<128x32xf32>
    %c0_6 = arith.constant 0 : index
    %c0_7 = arith.constant 0 : index
    %8 = vector.load %arg12[%c0_6, %c0_7] : memref<128x32xf32, #tpu.memory_space<vmem>>, vector<128x32xf32>
    tpu.vector_store %arg12[%c0_6, %c0_7], %7 {strides = array<i32>} : memref<128x32xf32, #tpu.memory_space<vmem>>, vector<128x32xf32>,
    %c0_i32_8 = arith.constant 0 : i32
    %9 = arith.cmpi eq, %arg1, %c0_i32_8 : i32
    %10 = arith.extui %9 : i1 to i32
    %c0_i32_9 = arith.constant 0 : i32
    %11 = arith.cmpi ne, %10, %c0_i32_9 : i32
    scf.if %11 {
      %c0_10 = arith.constant 0 : index
      %c0_11 = arith.constant 0 : index
      %12 = vector.load %arg12[%c0_10, %c0_11] : memref<128x32xf32, #tpu.memory_space<vmem>>, vector<128x32xf32>
      %13 = arith.truncf %12 : vector<128x32xf32> to vector<128x32xbf16>
      %c0_12 = arith.constant 0 : index
      %c0_13 = arith.constant 0 : index
      %14 = vector.load %arg5[%c0_12, %c0_13] : memref<32x128xbf16, #tpu.memory_space<vmem>>, vector<32x128xbf16>
      %cst_14 = arith.constant dense<0.000000e+00> : vector<128x128xf32>
      %15 = tpu.matmul %13, %14, %cst_14 {dimension_numbers = #tpu.dot_dimension_numbers<[1], [0], [0], [1], [0, 0, 1, 1], [], []>} : vector<128x32xbf16>, vector<32x128xbf16>, vector<128x128xf32> -> vector<128x128xf32>
      %c0_15 = arith.constant 0 : index
      %c0_16 = arith.constant 0 : index
      %16 = vector.load %arg6[%c0_15, %c0_16] : memref<1x128xf32, #tpu.memory_space<vmem>>, vector<1x128xf32>
      %17 = vector.broadcast %16 : vector<1x128xf32> to vector<128x128xf32>
      %18 = arith.addf %15, %17 : vector<128x128xf32>
      %c0_17 = arith.constant 0 : index
      %c0_18 = arith.constant 0 : index
      %19 = vector.load %arg4[%c0_17, %c0_18] : memref<128x32xbf16, #tpu.memory_space<vmem>>, vector<128x32xbf16>
      %c0_19 = arith.constant 0 : index
      %c0_20 = arith.constant 0 : index
      %20 = vector.load %arg7[%c0_19, %c0_20] : memref<32x128xbf16, #tpu.memory_space<vmem>>, vector<32x128xbf16>
      %cst_21 = arith.constant dense<0.000000e+00> : vector<128x128xf32>
      %21 = tpu.matmul %19, %20, %cst_21 {dimension_numbers = #tpu.dot_dimension_numbers<[1], [0], [0], [1], [0, 0, 1, 1], [], []>} : vector<128x32xbf16>, vector<32x128xbf16>, vector<128x128xf32> -> vector<128x128xf32>
      %c0_22 = arith.constant 0 : index
      %c0_23 = arith.constant 0 : index
      %22 = vector.load %arg8[%c0_22, %c0_23] : memref<1x128xf32, #tpu.memory_space<vmem>>, vector<1x128xf32>
      %23 = vector.broadcast %22 : vector<1x128xf32> to vector<128x128xf32>
      %24 = arith.addf %21, %23 : vector<128x128xf32>
      %cst_24 = arith.constant 0.000000e+00 : f32
      %25 = vector.broadcast %cst_24 : f32 to vector<128x128xf32>
      %26 = arith.maximumf %18, %25 : vector<128x128xf32>
      %cst_25 = arith.constant 0.000000e+00 : f32
      %27 = vector.broadcast %cst_25 : f32 to vector<128x128xf32>
      %28 = arith.maximumf %24, %27 : vector<128x128xf32>
      %29 = arith.addf %26, %28 : vector<128x128xf32>
      %c0_26 = arith.constant 0 : index
      %c0_27 = arith.constant 0 : index
      %30 = vector.load %arg9[%c0_26, %c0_27] : memref<1x128xf32, #tpu.memory_space<vmem>>, vector<1x128xf32>
      %31 = vector.broadcast %30 : vector<1x128xf32> to vector<128x128xf32>
      %32 = arith.mulf %29, %31 : vector<128x128xf32>
      %c0_28 = arith.constant 0 : index
      %c0_29 = arith.constant 0 : index
      %33 = vector.load %arg10[%c0_28, %c0_29] : memref<1x128xf32, #tpu.memory_space<vmem>>, vector<1x128xf32>
      %34 = vector.broadcast %33 : vector<1x128xf32> to vector<128x128xf32>
      %35 = arith.addf %32, %34 : vector<128x128xf32>
      %c0_30 = arith.constant 0 : index
      %c0_31 = arith.constant 0 : index
      %36 = vector.load %arg11[%c0_30, %c0_31] : memref<128x128xf32, #tpu.memory_space<vmem>>, vector<128x128xf32>
      tpu.vector_store %arg11[%c0_30, %c0_31], %35 {strides = array<i32>} : memref<128x128xf32, #tpu.memory_space<vmem>>, vector<128x128xf32>,
    } else {
    }
    return
  }
  func.func @transform_0(%arg0: i32, %arg1: i32) -> (i32, i32) {
    %c0_i32 = arith.constant 0 : i32
    return %arg0, %arg1 : i32, i32
  }
  func.func @transform_1(%arg0: i32, %arg1: i32) -> (i32, i32) {
    %c0_i32 = arith.constant 0 : i32
    %c0_i32_0 = arith.constant 0 : i32
    return %arg1, %c0_i32 : i32, i32
  }
  func.func @transform_2(%arg0: i32, %arg1: i32) -> (i32, i32) {
    %c0_i32 = arith.constant 0 : i32
    %c0_i32_0 = arith.constant 0 : i32
    return %arg0, %c0_i32 : i32, i32
  }
  func.func @transform_3(%arg0: i32, %arg1: i32) -> (i32, i32) {
    %c0_i32 = arith.constant 0 : i32
    %c0_i32_0 = arith.constant 0 : i32
    %c0_i32_1 = arith.constant 0 : i32
    return %c0_i32, %c0_i32_0 : i32, i32
  }
  func.func @transform_4(%arg0: i32, %arg1: i32) -> (i32, i32) {
    %c0_i32 = arith.constant 0 : i32
    %c0_i32_0 = arith.constant 0 : i32
    %c0_i32_1 = arith.constant 0 : i32
    return %c0_i32, %c0_i32_0 : i32, i32
  }
  func.func @transform_5(%arg0: i32, %arg1: i32) -> (i32, i32) {
    %c0_i32 = arith.constant 0 : i32
    %c0_i32_0 = arith.constant 0 : i32
    %c0_i32_1 = arith.constant 0 : i32
    return %c0_i32, %c0_i32_0 : i32, i32
  }
  func.func @transform_6(%arg0: i32, %arg1: i32) -> (i32, i32) {
    %c0_i32 = arith.constant 0 : i32
    %c0_i32_0 = arith.constant 0 : i32
    %c0_i32_1 = arith.constant 0 : i32
    return %c0_i32, %c0_i32_0 : i32, i32
  }
  func.func @transform_7(%arg0: i32, %arg1: i32) -> (i32, i32) {
    %c0_i32 = arith.constant 0 : i32
    %c0_i32_0 = arith.constant 0 : i32
    %c0_i32_1 = arith.constant 0 : i32
    return %c0_i32, %c0_i32_0 : i32, i32
  }
  func.func @transform_8(%arg0: i32, %arg1: i32) -> (i32, i32) {
    %c0_i32 = arith.constant 0 : i32
    %c0_i32_0 = arith.constant 0 : i32
    %c0_i32_1 = arith.constant 0 : i32
    return %c0_i32, %c0_i32_0 : i32, i32
  }
  func.func @transform_9(%arg0: i32, %arg1: i32) -> (i32, i32) {
    %c0_i32 = arith.constant 0 : i32
    %c0_i32_0 = arith.constant 0 : i32
    return %arg0, %c0_i32 : i32, i32
  }
}

</mosaic_0001>

<llo_original>
// kernel: tpu_custom_call.1
$region0: #{tpu_custom_call.1}
  #allocation0 [shape = 'u32[]', space=smem, size = 0x4, offset = 0x4, fixed_abs, tag = 'smem constant byte address 0x4 - core index']
  #allocation1 [shape = 'u32[144,128]{1,0:T(1,128)}', space=vmem, size = 0x12000, scoped, tag = 'internal scratch']
  #allocation2 [shape = 'f32[128,32]{1,0:T(8,128)}', space=vmem, size = 0x10000, scoped, tag = 'scratch operand']
  %s0 = inlined_call_operand.vmem [shape: bf16[128,128], index: 0, kind: input, shape index: {}]
  %s1 = inlined_call_operand.vmem [shape: bf16[128,32], index: 1, kind: input, shape index: {}]
  %s2 = inlined_call_operand.vmem [shape: bf16[128,32], index: 2, kind: input, shape index: {}]
  %s3 = inlined_call_operand.vmem [shape: bf16[32,128], index: 3, kind: input, shape index: {}]
  %s4 = inlined_call_operand.vmem [shape: f32[1,128], index: 4, kind: input, shape index: {}]
  %s5 = inlined_call_operand.vmem [shape: bf16[32,128], index: 5, kind: input, shape index: {}]
  %s6 = inlined_call_operand.vmem [shape: f32[1,128], index: 6, kind: input, shape index: {}]
  %s7 = inlined_call_operand.vmem [shape: f32[1,128], index: 7, kind: input, shape index: {}]
  %s8 = inlined_call_operand.vmem [shape: f32[1,128], index: 8, kind: input, shape index: {}]
  %s9 = inlined_call_operand.hbm [shape: f32[128,128], index: 9, kind: output, shape index: {}]
  %s10 = sld [smem:[#allocation0]]
  $region54: #{tpu_custom_call.1} parent=0
    _
  %s12 = ssub.s32 1, %s10
  %s13 = scalar_select 0, %s12, %s10
  $region1: #{tpu_custom_call.1} parent=0
    #allocation3 [shape = 'u8[65536]{0}', space=vmem, size = 0x10000, scoped, tag = 'output window, operand 0, single buffered']
    #allocation4 [shape = 's32[1]{0}', space=sflag, size = 0x4, scoped, tag = 'scoped memory for tpu_custom_call.1']
    %14 = vsyncpa [#allocation4], 0
    // Predicated region
    $region2: #{tpu_custom_call.1} parent=1 // pred_check
      _
    $region3: #{tpu_custom_call.1} parent=1 // pred_check_branch
      %16 = sbr.rel (0) target = $region5
    $region4: #{tpu_custom_call.1} parent=1 // pred_region
      _
    $region5: #{tpu_custom_call.1} parent=1 // pred_fallthru
      _
    // Predicated region
    $region6: #{tpu_custom_call.1} parent=1 // pred_check
      _
    $region7: #{tpu_custom_call.1} parent=1 // pred_check_branch
      %18 = sbr.rel (0) target = $region9
    $region8: #{tpu_custom_call.1} parent=1 // pred_region
      _
    $region9: #{tpu_custom_call.1} parent=1 // pred_fallthru
      _
    // Predicated region
    $region10: #{tpu_custom_call.1} parent=1 // pred_check
      _
    $region11: #{tpu_custom_call.1} parent=1 // pred_check_branch
      %20 = sbr.rel (0) target = $region13
    $region12: #{tpu_custom_call.1} parent=1 // pred_region
      _
    $region13: #{tpu_custom_call.1} parent=1 // pred_fallthru
      _
    // Predicated region
    $region14: #{tpu_custom_call.1} parent=1 // pred_check
      _
    $region15: #{tpu_custom_call.1} parent=1 // pred_check_branch
      %22 = sbr.rel (0) target = $region17
    $region16: #{tpu_custom_call.1} parent=1 // pred_region
      _
    $region17: #{tpu_custom_call.1} parent=1 // pred_fallthru
      _
    // Predicated region
    $region18: #{tpu_custom_call.1} parent=1 // pred_check
      _
    $region19: #{tpu_custom_call.1} parent=1 // pred_check_branch
      %24 = sbr.rel (0) target = $region21
    $region20: #{tpu_custom_call.1} parent=1 // pred_region
      _
    $region21: #{tpu_custom_call.1} parent=1 // pred_fallthru
      _
    // Predicated region
    $region22: #{tpu_custom_call.1} parent=1 // pred_check
      _
    $region23: #{tpu_custom_call.1} parent=1 // pred_check_branch
      %26 = sbr.rel (0) target = $region25
    $region24: #{tpu_custom_call.1} parent=1 // pred_region
      _
    $region25: #{tpu_custom_call.1} parent=1 // pred_fallthru
      _
    // Predicated region
    $region26: #{tpu_custom_call.1} parent=1 // pred_check
      _
    $region27: #{tpu_custom_call.1} parent=1 // pred_check_branch
      %28 = sbr.rel (0) target = $region29
    $region28: #{tpu_custom_call.1} parent=1 // pred_region
      _
    $region29: #{tpu_custom_call.1} parent=1 // pred_fallthru
      _
    // Predicated region
    $region30: #{tpu_custom_call.1} parent=1 // pred_check
      _
    $region31: #{tpu_custom_call.1} parent=1 // pred_check_branch
      %30 = sbr.rel (0) target = $region33
    $region32: #{tpu_custom_call.1} parent=1 // pred_region
      _
    $region33: #{tpu_custom_call.1} parent=1 // pred_fallthru
      _
    // Predicated region
    $region34: #{tpu_custom_call.1} parent=1 // pred_check
      _
    $region35: #{tpu_custom_call.1} parent=1 // pred_check_branch
      %32 = sbr.rel (0) target = $region37
    $region36: #{tpu_custom_call.1} parent=1 // pred_region
      _
    $region37: #{tpu_custom_call.1} parent=1 // pred_fallthru
      _
    %p34 = scmp.eq.s32.totalorder 0, 0
    // Predicated region
    $region38: #{tpu_custom_call.1} parent=1 // pred_check
      %p35 = pneg %p34
    $region39: #{tpu_custom_call.1} parent=1 // pred_check_branch
      %37 = sbr.rel (%p35) target = $region41
    $region40: #{tpu_custom_call.1} parent=1 // pred_region
      %vm38 = vcmask 261120
      %39 = vst.msk [vmem:[#allocation2] sm:$0xff] %vm38, 0.0
      %40 = vst.msk [vmem:[#allocation2 + $0x8] sm:$0xff] %vm38, 0.0
      %41 = vst.msk [vmem:[#allocation2 + $0x10] sm:$0xff] %vm38, 0.0
      %42 = vst.msk [vmem:[#allocation2 + $0x18] sm:$0xff] %vm38, 0.0
      %43 = vst.msk [vmem:[#allocation2 + $0x20] sm:$0xff] %vm38, 0.0
      %44 = vst.msk [vmem:[#allocation2 + $0x28] sm:$0xff] %vm38, 0.0
      %45 = vst.msk [vmem:[#allocation2 + $0x30] sm:$0xff] %vm38, 0.0
      %46 = vst.msk [vmem:[#allocation2 + $0x38] sm:$0xff] %vm38, 0.0
      %47 = vst.msk [vmem:[#allocation2 + $0x40] sm:$0xff] %vm38, 0.0
      %48 = vst.msk [vmem:[#allocation2 + $0x48] sm:$0xff] %vm38, 0.0
      %49 = vst.msk [vmem:[#allocation2 + $0x50] sm:$0xff] %vm38, 0.0
      %50 = vst.msk [vmem:[#allocation2 + $0x58] sm:$0xff] %vm38, 0.0
      %51 = vst.msk [vmem:[#allocation2 + $0x60] sm:$0xff] %vm38, 0.0
      %52 = vst.msk [vmem:[#allocation2 + $0x68] sm:$0xff] %vm38, 0.0
      %53 = vst.msk [vmem:[#allocation2 + $0x70] sm:$0xff] %vm38, 0.0
      %54 = vst.msk [vmem:[#allocation2 + $0x78] sm:$0xff] %vm38, 0.0
    $region41: #{tpu_custom_call.1} parent=1 // pred_fallthru
      _
    %v55 = vld [vmem:[#allocation2] sm:$0xff]
    %v56 = vld [vmem:[#allocation2 + $0x8] sm:$0xff]
    %v57 = vld [vmem:[#allocation2 + $0x10] sm:$0xff]
    %v58 = vld [vmem:[#allocation2 + $0x18] sm:$0xff]
    %v59 = vld [vmem:[#allocation2 + $0x20] sm:$0xff]
    %v60 = vld [vmem:[#allocation2 + $0x28] sm:$0xff]
    %v61 = vld [vmem:[#allocation2 + $0x30] sm:$0xff]
    %v62 = vld [vmem:[#allocation2 + $0x38] sm:$0xff]
    %v63 = vld [vmem:[#allocation2 + $0x40] sm:$0xff]
    %v64 = vld [vmem:[#allocation2 + $0x48] sm:$0xff]
    %v65 = vld [vmem:[#allocation2 + $0x50] sm:$0xff]
    %v66 = vld [vmem:[#allocation2 + $0x58] sm:$0xff]
    %v67 = vld [vmem:[#allocation2 + $0x60] sm:$0xff]
    %v68 = vld [vmem:[#allocation2 + $0x68] sm:$0xff]
    %v69 = vld [vmem:[#allocation2 + $0x70] sm:$0xff]
    %v70 = vld [vmem:[#allocation2 + $0x78] sm:$0xff]
    %v71 = vld [vmem:[%s0] sm:$0xf]
    %v72 = vld [vmem:[%s0 + $0x4] sm:$0xf]
    %v73 = vld [vmem:[%s0 + $0x8] sm:$0xf]
    %v74 = vld [vmem:[%s0 + $0xc] sm:$0xf]
    %v75 = vld [vmem:[%s0 + $0x10] sm:$0xf]
    %v76 = vld [vmem:[%s0 + $0x14] sm:$0xf]
    %v77 = vld [vmem:[%s0 + $0x18] sm:$0xf]
    %v78 = vld [vmem:[%s0 + $0x1c] sm:$0xf]
    %v79 = vld [vmem:[%s0 + $0x20] sm:$0xf]
    %v80 = vld [vmem:[%s0 + $0x24] sm:$0xf]
    %v81 = vld [vmem:[%s0 + $0x28] sm:$0xf]
    %v82 = vld [vmem:[%s0 + $0x2c] sm:$0xf]
    %v83 = vld [vmem:[%s0 + $0x30] sm:$0xf]
    %v84 = vld [vmem:[%s0 + $0x34] sm:$0xf]
    %v85 = vld [vmem:[%s0 + $0x38] sm:$0xf]
    %v86 = vld [vmem:[%s0 + $0x3c] sm:$0xf]
    %v87 = vld [vmem:[%s1] sm:$0xf]
    %v88 = vld [vmem:[%s1 + $0x4] sm:$0xf]
    %v89 = vld [vmem:[%s1 + $0x8] sm:$0xf]
    %v90 = vld [vmem:[%s1 + $0xc] sm:$0xf]
    %v91 = vld [vmem:[%s1 + $0x10] sm:$0xf]
    %v92 = vld [vmem:[%s1 + $0x14] sm:$0xf]
    %v93 = vld [vmem:[%s1 + $0x18] sm:$0xf]
    %v94 = vld [vmem:[%s1 + $0x1c] sm:$0xf]
    %v95 = vld [vmem:[%s1 + $0x20] sm:$0xf]
    %v96 = vld [vmem:[%s1 + $0x24] sm:$0xf]
    %v97 = vld [vmem:[%s1 + $0x28] sm:$0xf]
    %v98 = vld [vmem:[%s1 + $0x2c] sm:$0xf]
    %v99 = vld [vmem:[%s1 + $0x30] sm:$0xf]
    %v100 = vld [vmem:[%s1 + $0x34] sm:$0xf]
    %v101 = vld [vmem:[%s1 + $0x38] sm:$0xf]
    %v102 = vld [vmem:[%s1 + $0x3c] sm:$0xf]
    %v119 = vunpack.c.l.b16 %v71
    %v120 = vunpack.c.l.b16 %v72
    %v121 = vunpack.c.l.b16 %v73
    %v122 = vunpack.c.l.b16 %v74
    %v123 = vunpack.c.l.b16 %v75
    %v124 = vunpack.c.l.b16 %v76
    %v125 = vunpack.c.l.b16 %v77
    %v126 = vunpack.c.l.b16 %v78
    %v127 = vunpack.c.l.b16 %v79
    %v128 = vunpack.c.l.b16 %v80
    %v129 = vunpack.c.l.b16 %v81
    %v130 = vunpack.c.l.b16 %v82
    %v131 = vunpack.c.l.b16 %v83
    %v132 = vunpack.c.l.b16 %v84
    %v133 = vunpack.c.l.b16 %v85
    %v134 = vunpack.c.l.b16 %v86
    %v135 = vpack.c.b16 %v120, %v119
    %v136 = vpack.c.b16 %v122, %v121
    %v137 = vpack.c.b16 %v124, %v123
    %v138 = vpack.c.b16 %v126, %v125
    %v139 = vpack.c.b16 %v128, %v127
    %v140 = vpack.c.b16 %v130, %v129
    %v141 = vpack.c.b16 %v132, %v131
    %v142 = vpack.c.b16 %v134, %v133
    %v167 = vunpack.c.l.b16 %v87
    %v168 = vunpack.c.l.b16 %v88
    %v169 = vunpack.c.l.b16 %v89
    %v170 = vunpack.c.l.b16 %v90
    %v171 = vunpack.c.l.b16 %v91
    %v172 = vunpack.c.l.b16 %v92
    %v173 = vunpack.c.l.b16 %v93
    %v174 = vunpack.c.l.b16 %v94
    %v175 = vunpack.c.l.b16 %v95
    %v176 = vunpack.c.l.b16 %v96
    %v177 = vunpack.c.l.b16 %v97
    %v178 = vunpack.c.l.b16 %v98
    %v179 = vunpack.c.l.b16 %v99
    %v180 = vunpack.c.l.b16 %v100
    %v181 = vunpack.c.l.b16 %v101
    %v182 = vunpack.c.l.b16 %v102
    %v183 = vpack.c.b16 %v168, %v167
    %v184 = vpack.c.b16 %v170, %v169
    %v185 = vpack.c.b16 %v172, %v171
    %v186 = vpack.c.b16 %v174, %v173
    %v187 = vpack.c.b16 %v176, %v175
    %v188 = vpack.c.b16 %v178, %v177
    %v189 = vpack.c.b16 %v180, %v179
    %v190 = vpack.c.b16 %v182, %v181
    %199 = vmatprep.subr.bf16.mxu0 0
    %200 = vmatpush1.bf16.msra.mxu0 %v190
    %201 = vmatprep.subr.bf16.mxu0 0
    %202 = vmatpush1.bf16.msra.mxu0 %v189
    %203 = vmatprep.subr.bf16.mxu0 0
    %204 = vmatpush1.bf16.msra.mxu0 %v188
    %205 = vmatprep.subr.bf16.mxu0 0
    %206 = vmatpush1.bf16.msra.mxu0 %v187
    %207 = vmatprep.subr.bf16.mxu0 0
    %208 = vmatpush1.bf16.msra.mxu0 %v186
    %209 = vmatprep.subr.bf16.mxu0 0
    %210 = vmatpush1.bf16.msra.mxu0 %v185
    %211 = vmatprep.subr.bf16.mxu0 0
    %212 = vmatpush1.bf16.msra.mxu0 %v184
    %213 = vmatprep.subr.bf16.mxu0 0
    %214 = vmatpush1.bf16.msra.mxu0 %v183
    %215 = vmatprep.subr.bf16.mxu0 0
    %216 = vmatpush2.bf16.msra.mxu0 0
    %217 = vmatprep.subr.bf16.mxu0 0
    %218 = vmatpush2.bf16.msra.mxu0 0
    %219 = vmatprep.subr.bf16.mxu0 0
    %220 = vmatpush2.bf16.msra.mxu0 0
    %221 = vmatprep.subr.bf16.mxu0 0
    %222 = vmatpush2.bf16.msra.mxu0 0
    %223 = vmatprep.subr.bf16.mxu0 0
    %224 = vmatpush2.bf16.msra.mxu0 0
    %225 = vmatprep.subr.bf16.mxu0 0
    %226 = vmatpush2.bf16.msra.mxu0 0
    %227 = vmatprep.subr.bf16.mxu0 0
    %228 = vmatpush2.bf16.msra.mxu0 0
    %229 = vmatprep.subr.bf16.mxu0 0
    %230 = vmatpush2.bf16.msra.mxu0 0
    %231 = vmatprep.mubr.bf16.mxu0 0
    %232 = vmatmul.mubr.bf16.gmra.mxu0 %v135
    %v233 = vpop.f32.mrf.mxu0
    %v234 = vadd.f32 0.0, %v233
    %v235 = vpop.f32.mrf.mxu0
    %v236 = vpop.f32.mrf.mxu0
    %v237 = vadd.f32 0.0, %v236
    %v238 = vpop.f32.mrf.mxu0
    %239 = vmatprep.mubr.bf16.mxu0 0
    %240 = vmatmul.mubr.bf16.gmra.mxu0 %v136
    %v241 = vpop.f32.mrf.mxu0
    %v242 = vadd.f32 0.0, %v241
    %v243 = vpop.f32.mrf.mxu0
    %v244 = vpop.f32.mrf.mxu0
    %v245 = vadd.f32 0.0, %v244
    %v246 = vpop.f32.mrf.mxu0
    %247 = vmatprep.mubr.bf16.mxu0 0
    %248 = vmatmul.mubr.bf16.gmra.mxu0 %v137
    %v249 = vpop.f32.mrf.mxu0
    %v250 = vadd.f32 0.0, %v249
    %v251 = vpop.f32.mrf.mxu0
    %v252 = vpop.f32.mrf.mxu0
    %v253 = vadd.f32 0.0, %v252
    %v254 = vpop.f32.mrf.mxu0
    %255 = vmatprep.mubr.bf16.mxu0 0
    %256 = vmatmul.mubr.bf16.gmra.mxu0 %v138
    %v257 = vpop.f32.mrf.mxu0
    %v258 = vadd.f32 0.0, %v257
    %v259 = vpop.f32.mrf.mxu0
    %v260 = vpop.f32.mrf.mxu0
    %v261 = vadd.f32 0.0, %v260
    %v262 = vpop.f32.mrf.mxu0
    %263 = vmatprep.mubr.bf16.mxu0 0
    %264 = vmatmul.mubr.bf16.gmra.mxu0 %v139
    %v265 = vpop.f32.mrf.mxu0
    %v266 = vadd.f32 0.0, %v265
    %v267 = vpop.f32.mrf.mxu0
    %v268 = vpop.f32.mrf.mxu0
    %v269 = vadd.f32 0.0, %v268
    %v270 = vpop.f32.mrf.mxu0
    %271 = vmatprep.mubr.bf16.mxu0 0
    %272 = vmatmul.mubr.bf16.gmra.mxu0 %v140
    %v273 = vpop.f32.mrf.mxu0
    %v274 = vadd.f32 0.0, %v273
    %v275 = vpop.f32.mrf.mxu0
    %v276 = vpop.f32.mrf.mxu0
    %v277 = vadd.f32 0.0, %v276
    %v278 = vpop.f32.mrf.mxu0
    %279 = vmatprep.mubr.bf16.mxu0 0
    %280 = vmatmul.mubr.bf16.gmra.mxu0 %v141
    %v281 = vpop.f32.mrf.mxu0
    %v282 = vadd.f32 0.0, %v281
    %v283 = vpop.f32.mrf.mxu0
    %v284 = vpop.f32.mrf.mxu0
    %v285 = vadd.f32 0.0, %v284
    %v286 = vpop.f32.mrf.mxu0
    %287 = vmatprep.mubr.bf16.mxu0 0
    %288 = vmatmul.mubr.bf16.gmra.mxu0 %v142
    %v289 = vpop.f32.mrf.mxu0
    %v290 = vadd.f32 0.0, %v289
    %v291 = vpop.f32.mrf.mxu0
    %v292 = vpop.f32.mrf.mxu0
    %v293 = vadd.f32 0.0, %v292
    %v294 = vpop.f32.mrf.mxu0
    %295 = vdwg.mxu0
    %v296 = vadd.f32 %v55, %v234
    %v297 = vadd.f32 %v56, %v237
    %v298 = vadd.f32 %v57, %v242
    %v299 = vadd.f32 %v58, %v245
    %v300 = vadd.f32 %v59, %v250
    %v301 = vadd.f32 %v60, %v253
    %v302 = vadd.f32 %v61, %v258
    %v303 = vadd.f32 %v62, %v261
    %v304 = vadd.f32 %v63, %v266
    %v305 = vadd.f32 %v64, %v269
    %v306 = vadd.f32 %v65, %v274
    %v307 = vadd.f32 %v66, %v277
    %v308 = vadd.f32 %v67, %v282
    %v309 = vadd.f32 %v68, %v285
    %v310 = vadd.f32 %v69, %v290
    %v311 = vadd.f32 %v70, %v293
    %vm312 = vcmask 261120
    %313 = vst.msk [vmem:[#allocation2] sm:$0xff] %vm312, %v296
    %314 = vst.msk [vmem:[#allocation2 + $0x8] sm:$0xff] %vm312, %v297
    %315 = vst.msk [vmem:[#allocation2 + $0x10] sm:$0xff] %vm312, %v298
    %316 = vst.msk [vmem:[#allocation2 + $0x18] sm:$0xff] %vm312, %v299
    %317 = vst.msk [vmem:[#allocation2 + $0x20] sm:$0xff] %vm312, %v300
    %318 = vst.msk [vmem:[#allocation2 + $0x28] sm:$0xff] %vm312, %v301
    %319 = vst.msk [vmem:[#allocation2 + $0x30] sm:$0xff] %vm312, %v302
    %320 = vst.msk [vmem:[#allocation2 + $0x38] sm:$0xff] %vm312, %v303
    %321 = vst.msk [vmem:[#allocation2 + $0x40] sm:$0xff] %vm312, %v304
    %322 = vst.msk [vmem:[#allocation2 + $0x48] sm:$0xff] %vm312, %v305
    %323 = vst.msk [vmem:[#allocation2 + $0x50] sm:$0xff] %vm312, %v306
    %324 = vst.msk [vmem:[#allocation2 + $0x58] sm:$0xff] %vm312, %v307
    %325 = vst.msk [vmem:[#allocation2 + $0x60] sm:$0xff] %vm312, %v308
    %326 = vst.msk [vmem:[#allocation2 + $0x68] sm:$0xff] %vm312, %v309
    %327 = vst.msk [vmem:[#allocation2 + $0x70] sm:$0xff] %vm312, %v310
    %328 = vst.msk [vmem:[#allocation2 + $0x78] sm:$0xff] %vm312, %v311
    // Predicated region
    $region42: #{tpu_custom_call.1} parent=1 // pred_check
      %p329 = pneg %p34
    $region43: #{tpu_custom_call.1} parent=1 // pred_check_branch
      %331 = sbr.rel (%p329) target = $region45
    $region44: #{tpu_custom_call.1} parent=1 // pred_region
      %v332 = vld [vmem:[#allocation2] sm:$0xff]
      %v333 = vld [vmem:[#allocation2 + $0x8] sm:$0xff]
      %v334 = vld [vmem:[#allocation2 + $0x10] sm:$0xff]
      %v335 = vld [vmem:[#allocation2 + $0x18] sm:$0xff]
      %v336 = vld [vmem:[#allocation2 + $0x20] sm:$0xff]
      %v337 = vld [vmem:[#allocation2 + $0x28] sm:$0xff]
      %v338 = vld [vmem:[#allocation2 + $0x30] sm:$0xff]
      %v339 = vld [vmem:[#allocation2 + $0x38] sm:$0xff]
      %v340 = vld [vmem:[#allocation2 + $0x40] sm:$0xff]
      %v341 = vld [vmem:[#allocation2 + $0x48] sm:$0xff]
      %v342 = vld [vmem:[#allocation2 + $0x50] sm:$0xff]
      %v343 = vld [vmem:[#allocation2 + $0x58] sm:$0xff]
      %v344 = vld [vmem:[#allocation2 + $0x60] sm:$0xff]
      %v345 = vld [vmem:[#allocation2 + $0x68] sm:$0xff]
      %v346 = vld [vmem:[#allocation2 + $0x70] sm:$0xff]
      %v347 = vld [vmem:[#allocation2 + $0x78] sm:$0xff]
      %v348 = vpack.c.bf16 %v333, %v332
      %v349 = vpack.c.bf16 %v335, %v334
      %v350 = vpack.c.bf16 %v337, %v336
      %v351 = vpack.c.bf16 %v339, %v338
      %v352 = vpack.c.bf16 %v341, %v340
      %v353 = vpack.c.bf16 %v343, %v342
      %v354 = vpack.c.bf16 %v345, %v344
      %v355 = vpack.c.bf16 %v347, %v346
      %v356 = vld [vmem:[%s3] sm:$0xf]
      %v357 = vld [vmem:[%s3 + $0x4] sm:$0xf]
      %v358 = vld [vmem:[%s3 + $0x8] sm:$0xf]
      %v359 = vld [vmem:[%s3 + $0xc] sm:$0xf]
      %v360 = vld [vmem:[%s4] sm:$0x1]
      %v362 = vlaneseq
      %v363 = vshrl.u32 %v362, 7
      %v364 = vsub.s32 0, %v363
      %v365 = vrot.slane %v360, %v364
      %v371 = vunpack.c.l.b16 %v356
      %v372 = vunpack.c.l.b16 %v357
      %v373 = vunpack.c.l.b16 %v358
      %v374 = vunpack.c.l.b16 %v359
      %v375 = vpack.c.b16 %v372, %v371
      %v376 = vpack.c.b16 %v374, %v373
      %v380 = vsel %vm312, %v348, 0
      %v383 = vsel %vm312, %v349, 0
      %v386 = vsel %vm312, %v350, 0
      %v389 = vsel %vm312, %v351, 0
      %v392 = vsel %vm312, %v352, 0
      %v395 = vsel %vm312, %v353, 0
      %v398 = vsel %vm312, %v354, 0
      %v401 = vsel %vm312, %v355, 0
      %403 = vmatprep.subr.bf16.mxu0 0
      %404 = vmatpush1.bf16.msra.mxu0 0
      %405 = vmatprep.subr.bf16.mxu0 0
      %406 = vmatpush1.bf16.msra.mxu0 0
      %407 = vmatprep.subr.bf16.mxu0 0
      %408 = vmatpush1.bf16.msra.mxu0 0
      %409 = vmatprep.subr.bf16.mxu0 0
      %410 = vmatpush1.bf16.msra.mxu0 0
      %411 = vmatprep.subr.bf16.mxu0 0
      %412 = vmatpush1.bf16.msra.mxu0 0
      %413 = vmatprep.subr.bf16.mxu0 0
      %414 = vmatpush1.bf16.msra.mxu0 0
      %415 = vmatprep.subr.bf16.mxu0 0
      %416 = vmatpush1.bf16.msra.mxu0 %v376
      %417 = vmatprep.subr.bf16.mxu0 0
      %418 = vmatpush1.bf16.msra.mxu0 %v375
      %419 = vmatprep.subr.bf16.mxu0 0
      %420 = vmatpush2.bf16.msra.mxu0 0
      %421 = vmatprep.subr.bf16.mxu0 0
      %422 = vmatpush2.bf16.msra.mxu0 0
      %423 = vmatprep.subr.bf16.mxu0 0
      %424 = vmatpush2.bf16.msra.mxu0 0
      %425 = vmatprep.subr.bf16.mxu0 0
      %426 = vmatpush2.bf16.msra.mxu0 0
      %427 = vmatprep.subr.bf16.mxu0 0
      %428 = vmatpush2.bf16.msra.mxu0 0
      %429 = vmatprep.subr.bf16.mxu0 0
      %430 = vmatpush2.bf16.msra.mxu0 0
      %431 = vmatprep.subr.bf16.mxu0 0
      %432 = vmatpush2.bf16.msra.mxu0 0
      %433 = vmatprep.subr.bf16.mxu0 0
      %434 = vmatpush2.bf16.msra.mxu0 0
      %435 = vmatprep.mubr.bf16.mxu0 0
      %436 = vmatmul.mubr.bf16.gmra.mxu0 %v380
      %v437 = vpop.f32.mrf.mxu0
      %v438 = vadd.f32 %v365, %v437
      %v439 = vpop.f32.mrf.mxu0
      %v440 = vpop.f32.mrf.mxu0
      %v441 = vadd.f32 %v365, %v440
      %v442 = vpop.f32.mrf.mxu0
      %443 = vmatprep.mubr.bf16.mxu0 0
      %444 = vmatmul.mubr.bf16.gmra.mxu0 %v383
      %v445 = vpop.f32.mrf.mxu0
      %v446 = vadd.f32 %v365, %v445
      %v447 = vpop.f32.mrf.mxu0
      %v448 = vpop.f32.mrf.mxu0
      %v449 = vadd.f32 %v365, %v448
      %v450 = vpop.f32.mrf.mxu0
      %451 = vmatprep.mubr.bf16.mxu0 0
      %452 = vmatmul.mubr.bf16.gmra.mxu0 %v386
      %v453 = vpop.f32.mrf.mxu0
      %v454 = vadd.f32 %v365, %v453
      %v455 = vpop.f32.mrf.mxu0
      %v456 = vpop.f32.mrf.mxu0
      %v457 = vadd.f32 %v365, %v456
      %v458 = vpop.f32.mrf.mxu0
      %459 = vmatprep.mubr.bf16.mxu0 0
      %460 = vmatmul.mubr.bf16.gmra.mxu0 %v389
      %v461 = vpop.f32.mrf.mxu0
      %v462 = vadd.f32 %v365, %v461
      %v463 = vpop.f32.mrf.mxu0
      %v464 = vpop.f32.mrf.mxu0
      %v465 = vadd.f32 %v365, %v464
      %v466 = vpop.f32.mrf.mxu0
      %467 = vmatprep.mubr.bf16.mxu0 0
      %468 = vmatmul.mubr.bf16.gmra.mxu0 %v392
      %v469 = vpop.f32.mrf.mxu0
      %v470 = vadd.f32 %v365, %v469
      %v471 = vpop.f32.mrf.mxu0
      %v472 = vpop.f32.mrf.mxu0
      %v473 = vadd.f32 %v365, %v472
      %v474 = vpop.f32.mrf.mxu0
      %475 = vmatprep.mubr.bf16.mxu0 0
      %476 = vmatmul.mubr.bf16.gmra.mxu0 %v395
      %v477 = vpop.f32.mrf.mxu0
      %v478 = vadd.f32 %v365, %v477
      %v479 = vpop.f32.mrf.mxu0
      %v480 = vpop.f32.mrf.mxu0
      %v481 = vadd.f32 %v365, %v480
      %v482 = vpop.f32.mrf.mxu0
      %483 = vmatprep.mubr.bf16.mxu0 0
      %484 = vmatmul.mubr.bf16.gmra.mxu0 %v398
      %v485 = vpop.f32.mrf.mxu0
      %v486 = vadd.f32 %v365, %v485
      %v487 = vpop.f32.mrf.mxu0
      %v488 = vpop.f32.mrf.mxu0
      %v489 = vadd.f32 %v365, %v488
      %v490 = vpop.f32.mrf.mxu0
      %491 = vmatprep.mubr.bf16.mxu0 0
      %492 = vmatmul.mubr.bf16.gmra.mxu0 %v401
      %v493 = vpop.f32.mrf.mxu0
      %v494 = vadd.f32 %v365, %v493
      %v495 = vpop.f32.mrf.mxu0
      %v496 = vpop.f32.mrf.mxu0
      %v497 = vadd.f32 %v365, %v496
      %v498 = vpop.f32.mrf.mxu0
      %499 = vdwg.mxu0
      %v500 = vld [vmem:[%s2] sm:$0xf]
      %v501 = vld [vmem:[%s2 + $0x4] sm:$0xf]
      %v502 = vld [vmem:[%s2 + $0x8] sm:$0xf]
      %v503 = vld [vmem:[%s2 + $0xc] sm:$0xf]
      %v504 = vld [vmem:[%s2 + $0x10] sm:$0xf]
      %v505 = vld [vmem:[%s2 + $0x14] sm:$0xf]
      %v506 = vld [vmem:[%s2 + $0x18] sm:$0xf]
      %v507 = vld [vmem:[%s2 + $0x1c] sm:$0xf]
      %v508 = vld [vmem:[%s2 + $0x20] sm:$0xf]
      %v509 = vld [vmem:[%s2 + $0x24] sm:$0xf]
      %v510 = vld [vmem:[%s2 + $0x28] sm:$0xf]
      %v511 = vld [vmem:[%s2 + $0x2c] sm:$0xf]
      %v512 = vld [vmem:[%s2 + $0x30] sm:$0xf]
      %v513 = vld [vmem:[%s2 + $0x34] sm:$0xf]
      %v514 = vld [vmem:[%s2 + $0x38] sm:$0xf]
      %v515 = vld [vmem:[%s2 + $0x3c] sm:$0xf]
      %v516 = vld [vmem:[%s5] sm:$0xf]
      %v517 = vld [vmem:[%s5 + $0x4] sm:$0xf]
      %v518 = vld [vmem:[%s5 + $0x8] sm:$0xf]
      %v519 = vld [vmem:[%s5 + $0xc] sm:$0xf]
      %v520 = vld [vmem:[%s6] sm:$0x1]
      %v522 = vlaneseq
      %v523 = vshrl.u32 %v522, 7
      %v524 = vsub.s32 0, %v523
      %v525 = vrot.slane %v520, %v524
      %v543 = vunpack.c.l.b16 %v500
      %v544 = vunpack.c.l.b16 %v501
      %v545 = vunpack.c.l.b16 %v502
      %v546 = vunpack.c.l.b16 %v503
      %v547 = vunpack.c.l.b16 %v504
      %v548 = vunpack.c.l.b16 %v505
      %v549 = vunpack.c.l.b16 %v506
      %v550 = vunpack.c.l.b16 %v507
      %v551 = vunpack.c.l.b16 %v508
      %v552 = vunpack.c.l.b16 %v509
      %v553 = vunpack.c.l.b16 %v510
      %v554 = vunpack.c.l.b16 %v511
      %v555 = vunpack.c.l.b16 %v512
      %v556 = vunpack.c.l.b16 %v513
      %v557 = vunpack.c.l.b16 %v514
      %v558 = vunpack.c.l.b16 %v515
      %v559 = vpack.c.b16 %v544, %v543
      %v560 = vpack.c.b16 %v546, %v545
      %v561 = vpack.c.b16 %v548, %v547
      %v562 = vpack.c.b16 %v550, %v549
      %v563 = vpack.c.b16 %v552, %v551
      %v564 = vpack.c.b16 %v554, %v553
      %v565 = vpack.c.b16 %v556, %v555
      %v566 = vpack.c.b16 %v558, %v557
      %v571 = vunpack.c.l.b16 %v516
      %v572 = vunpack.c.l.b16 %v517
      %v573 = vunpack.c.l.b16 %v518
      %v574 = vunpack.c.l.b16 %v519
      %v575 = vpack.c.b16 %v572, %v571
      %v576 = vpack.c.b16 %v574, %v573
      %v580 = vsel %vm312, %v559, 0
      %v583 = vsel %vm312, %v560, 0
      %v586 = vsel %vm312, %v561, 0
      %v589 = vsel %vm312, %v562, 0
      %v592 = vsel %vm312, %v563, 0
      %v595 = vsel %vm312, %v564, 0
      %v598 = vsel %vm312, %v565, 0
      %v601 = vsel %vm312, %v566, 0
      %603 = vmatprep.subr.bf16.mxu0 0
      %604 = vmatpush1.bf16.msra.mxu0 0
      %605 = vmatprep.subr.bf16.mxu0 0
      %606 = vmatpush1.bf16.msra.mxu0 0
      %607 = vmatprep.subr.bf16.mxu0 0
      %608 = vmatpush1.bf16.msra.mxu0 0
      %609 = vmatprep.subr.bf16.mxu0 0
      %610 = vmatpush1.bf16.msra.mxu0 0
      %611 = vmatprep.subr.bf16.mxu0 0
      %612 = vmatpush1.bf16.msra.mxu0 0
      %613 = vmatprep.subr.bf16.mxu0 0
      %614 = vmatpush1.bf16.msra.mxu0 0
      %615 = vmatprep.subr.bf16.mxu0 0
      %616 = vmatpush1.bf16.msra.mxu0 %v576
      %617 = vmatprep.subr.bf16.mxu0 0
      %618 = vmatpush1.bf16.msra.mxu0 %v575
      %619 = vmatprep.subr.bf16.mxu0 0
      %620 = vmatpush2.bf16.msra.mxu0 0
      %621 = vmatprep.subr.bf16.mxu0 0
      %622 = vmatpush2.bf16.msra.mxu0 0
      %623 = vmatprep.subr.bf16.mxu0 0
      %624 = vmatpush2.bf16.msra.mxu0 0
      %625 = vmatprep.subr.bf16.mxu0 0
      %626 = vmatpush2.bf16.msra.mxu0 0
      %627 = vmatprep.subr.bf16.mxu0 0
      %628 = vmatpush2.bf16.msra.mxu0 0
      %629 = vmatprep.subr.bf16.mxu0 0
      %630 = vmatpush2.bf16.msra.mxu0 0
      %631 = vmatprep.subr.bf16.mxu0 0
      %632 = vmatpush2.bf16.msra.mxu0 0
      %633 = vmatprep.subr.bf16.mxu0 0
      %634 = vmatpush2.bf16.msra.mxu0 0
      %635 = vmatprep.mubr.bf16.mxu0 0
      %636 = vmatmul.mubr.bf16.gmra.mxu0 %v580
      %v637 = vpop.f32.mrf.mxu0
      %v638 = vadd.f32 %v525, %v637
      %v639 = vpop.f32.mrf.mxu0
      %v640 = vpop.f32.mrf.mxu0
      %v641 = vadd.f32 %v525, %v640
      %v642 = vpop.f32.mrf.mxu0
      %643 = vmatprep.mubr.bf16.mxu0 0
      %644 = vmatmul.mubr.bf16.gmra.mxu0 %v583
      %v645 = vpop.f32.mrf.mxu0
      %v646 = vadd.f32 %v525, %v645
      %v647 = vpop.f32.mrf.mxu0
      %v648 = vpop.f32.mrf.mxu0
      %v649 = vadd.f32 %v525, %v648
      %v650 = vpop.f32.mrf.mxu0
      %651 = vmatprep.mubr.bf16.mxu0 0
      %652 = vmatmul.mubr.bf16.gmra.mxu0 %v586
      %v653 = vpop.f32.mrf.mxu0
      %v654 = vadd.f32 %v525, %v653
      %v655 = vpop.f32.mrf.mxu0
      %v656 = vpop.f32.mrf.mxu0
      %v657 = vadd.f32 %v525, %v656
      %v658 = vpop.f32.mrf.mxu0
      %659 = vmatprep.mubr.bf16.mxu0 0
      %660 = vmatmul.mubr.bf16.gmra.mxu0 %v589
      %v661 = vpop.f32.mrf.mxu0
      %v662 = vadd.f32 %v525, %v661
      %v663 = vpop.f32.mrf.mxu0
      %v664 = vpop.f32.mrf.mxu0
      %v665 = vadd.f32 %v525, %v664
      %v666 = vpop.f32.mrf.mxu0
      %667 = vmatprep.mubr.bf16.mxu0 0
      %668 = vmatmul.mubr.bf16.gmra.mxu0 %v592
      %v669 = vpop.f32.mrf.mxu0
      %v670 = vadd.f32 %v525, %v669
      %v671 = vpop.f32.mrf.mxu0
      %v672 = vpop.f32.mrf.mxu0
      %v673 = vadd.f32 %v525, %v672
      %v674 = vpop.f32.mrf.mxu0
      %675 = vmatprep.mubr.bf16.mxu0 0
      %676 = vmatmul.mubr.bf16.gmra.mxu0 %v595
      %v677 = vpop.f32.mrf.mxu0
      %v678 = vadd.f32 %v525, %v677
      %v679 = vpop.f32.mrf.mxu0
      %v680 = vpop.f32.mrf.mxu0
      %v681 = vadd.f32 %v525, %v680
      %v682 = vpop.f32.mrf.mxu0
      %683 = vmatprep.mubr.bf16.mxu0 0
      %684 = vmatmul.mubr.bf16.gmra.mxu0 %v598
      %v685 = vpop.f32.mrf.mxu0
      %v686 = vadd.f32 %v525, %v685
      %v687 = vpop.f32.mrf.mxu0
      %v688 = vpop.f32.mrf.mxu0
      %v689 = vadd.f32 %v525, %v688
      %v690 = vpop.f32.mrf.mxu0
      %691 = vmatprep.mubr.bf16.mxu0 0
      %692 = vmatmul.mubr.bf16.gmra.mxu0 %v601
      %v693 = vpop.f32.mrf.mxu0
      %v694 = vadd.f32 %v525, %v693
      %v695 = vpop.f32.mrf.mxu0
      %v696 = vpop.f32.mrf.mxu0
      %v697 = vadd.f32 %v525, %v696
      %v698 = vpop.f32.mrf.mxu0
      %699 = vdwg.mxu0
      %v700 = vmax.f32 %v438, 0.0
      %v701 = vmax.f32 %v441, 0.0
      %v702 = vmax.f32 %v446, 0.0
      %v703 = vmax.f32 %v449, 0.0
      %v704 = vmax.f32 %v454, 0.0
      %v705 = vmax.f32 %v457, 0.0
      %v706 = vmax.f32 %v462, 0.0
      %v707 = vmax.f32 %v465, 0.0
      %v708 = vmax.f32 %v470, 0.0
      %v709 = vmax.f32 %v473, 0.0
      %v710 = vmax.f32 %v478, 0.0
      %v711 = vmax.f32 %v481, 0.0
      %v712 = vmax.f32 %v486, 0.0
      %v713 = vmax.f32 %v489, 0.0
      %v714 = vmax.f32 %v494, 0.0
      %v715 = vmax.f32 %v497, 0.0
      %v716 = vmax.f32 %v638, 0.0
      %v717 = vmax.f32 %v641, 0.0
      %v718 = vmax.f32 %v646, 0.0
      %v719 = vmax.f32 %v649, 0.0
      %v720 = vmax.f32 %v654, 0.0
      %v721 = vmax.f32 %v657, 0.0
      %v722 = vmax.f32 %v662, 0.0
      %v723 = vmax.f32 %v665, 0.0
      %v724 = vmax.f32 %v670, 0.0
      %v725 = vmax.f32 %v673, 0.0
      %v726 = vmax.f32 %v678, 0.0
      %v727 = vmax.f32 %v681, 0.0
      %v728 = vmax.f32 %v686, 0.0
      %v729 = vmax.f32 %v689, 0.0
      %v730 = vmax.f32 %v694, 0.0
      %v731 = vmax.f32 %v697, 0.0
      %v732 = vadd.f32 %v700, %v716
      %v733 = vadd.f32 %v701, %v717
      %v734 = vadd.f32 %v702, %v718
      %v735 = vadd.f32 %v703, %v719
      %v736 = vadd.f32 %v704, %v720
      %v737 = vadd.f32 %v705, %v721
      %v738 = vadd.f32 %v706, %v722
      %v739 = vadd.f32 %v707, %v723
      %v740 = vadd.f32 %v708, %v724
      %v741 = vadd.f32 %v709, %v725
      %v742 = vadd.f32 %v710, %v726
      %v743 = vadd.f32 %v711, %v727
      %v744 = vadd.f32 %v712, %v728
      %v745 = vadd.f32 %v713, %v729
      %v746 = vadd.f32 %v714, %v730
      %v747 = vadd.f32 %v715, %v731
      %v748 = vld [vmem:[%s7] sm:$0x1]
      %v750 = vlaneseq
      %v751 = vshrl.u32 %v750, 7
      %v752 = vsub.s32 0, %v751
      %v753 = vrot.slane %v748, %v752
      %v755 = vmul.f32 %v732, %v753
      %v756 = vmul.f32 %v733, %v753
      %v757 = vmul.f32 %v734, %v753
      %v758 = vmul.f32 %v735, %v753
      %v759 = vmul.f32 %v736, %v753
      %v760 = vmul.f32 %v737, %v753
      %v761 = vmul.f32 %v738, %v753
      %v762 = vmul.f32 %v739, %v753
      %v763 = vmul.f32 %v740, %v753
      %v764 = vmul.f32 %v741, %v753
      %v765 = vmul.f32 %v742, %v753
      %v766 = vmul.f32 %v743, %v753
      %v767 = vmul.f32 %v744, %v753
      %v768 = vmul.f32 %v745, %v753
      %v769 = vmul.f32 %v746, %v753
      %v770 = vmul.f32 %v747, %v753
      %v771 = vld [vmem:[%s8] sm:$0x1]
      %v773 = vlaneseq
      %v774 = vshrl.u32 %v773, 7
      %v775 = vsub.s32 0, %v774
      %v776 = vrot.slane %v771, %v775
      %v778 = vadd.f32 %v755, %v776
      %v779 = vadd.f32 %v756, %v776
      %v780 = vadd.f32 %v757, %v776
      %v781 = vadd.f32 %v758, %v776
      %v782 = vadd.f32 %v759, %v776
      %v783 = vadd.f32 %v760, %v776
      %v784 = vadd.f32 %v761, %v776
      %v785 = vadd.f32 %v762, %v776
      %v786 = vadd.f32 %v763, %v776
      %v787 = vadd.f32 %v764, %v776
      %v788 = vadd.f32 %v765, %v776
      %v789 = vadd.f32 %v766, %v776
      %v790 = vadd.f32 %v767, %v776
      %v791 = vadd.f32 %v768, %v776
      %v792 = vadd.f32 %v769, %v776
      %v793 = vadd.f32 %v770, %v776
      %794 = vst [vmem:[#allocation3] sm:$0xff] %v778
      %795 = vst [vmem:[#allocation3 + $0x8] sm:$0xff] %v779
      %796 = vst [vmem:[#allocation3 + $0x10] sm:$0xff] %v780
      %797 = vst [vmem:[#allocation3 + $0x18] sm:$0xff] %v781
      %798 = vst [vmem:[#allocation3 + $0x20] sm:$0xff] %v782
      %799 = vst [vmem:[#allocation3 + $0x28] sm:$0xff] %v783
      %800 = vst [vmem:[#allocation3 + $0x30] sm:$0xff] %v784
      %801 = vst [vmem:[#allocation3 + $0x38] sm:$0xff] %v785
      %802 = vst [vmem:[#allocation3 + $0x40] sm:$0xff] %v786
      %803 = vst [vmem:[#allocation3 + $0x48] sm:$0xff] %v787
      %804 = vst [vmem:[#allocation3 + $0x50] sm:$0xff] %v788
      %805 = vst [vmem:[#allocation3 + $0x58] sm:$0xff] %v789
      %806 = vst [vmem:[#allocation3 + $0x60] sm:$0xff] %v790
      %807 = vst [vmem:[#allocation3 + $0x68] sm:$0xff] %v791
      %808 = vst [vmem:[#allocation3 + $0x70] sm:$0xff] %v792
      %809 = vst [vmem:[#allocation3 + $0x78] sm:$0xff] %v793
    $region45: #{tpu_custom_call.1} parent=1 // pred_fallthru
      _
    // Predicated region
    $region46: #{tpu_custom_call.1} parent=1 // pred_check
      _
    $region47: #{tpu_custom_call.1} parent=1 // pred_check_branch
      %811 = sbr.rel (0) target = $region49
    $region48: #{tpu_custom_call.1} parent=1 // pred_region
      %s813 = ssub.s32 2048, 2048
      %814 = vsyncadd [#allocation4], %s813
      %s815 = sshll.u32 [#allocation3], 4
      %s816 = int_to_ptr.vmem [resolvable:$true] %s815
      %821 = dma.vmem_to_hbm [thread:$0]  %s816, 2048, %s9, [#allocation4], 128, 128, 8
    $region49: #{tpu_custom_call.1} parent=1 // pred_fallthru
      _
    // Predicated region
    $region50: #{tpu_custom_call.1} parent=1 // pred_check
      _
    $region51: #{tpu_custom_call.1} parent=1 // pred_check_branch
      %823 = sbr.rel (0) target = $region53
    $region52: #{tpu_custom_call.1} parent=1 // pred_region
      %824 = dma.done [#allocation4], 2048
    $region53: #{tpu_custom_call.1} parent=1 // pred_fallthru
      _
    %825 = vsyncpa [#allocation4], 1

</llo_original>
